<compile_context>
chip_gen: v7x
topology: tpu7x:2x2x1
jax: 0.10.0
libtpu: 0.0.40
codegen_flags: <defaults>
</compile_context>

<pallas_src>
import math

import jax
import jax.numpy as jnp
from jax.experimental import pallas as pl
from jax.experimental.pallas import tpu as pltpu


# Explicit scoped-VMEM limit: above v5e's 16 MiB default (so 4 MiB blocks,
# double-buffered in+out = ~16-24 MiB, fit), below v7x's 64 MiB physical.
_VMEM_LIMIT_BYTES = 40 << 20


def _round_up(x: int, m: int) -> int:
    return ((x + m - 1) // m) * m


# ---------------------------------------------------------------------------
# Kernel: out = start * exp(progress * log(end/start))   (pure elementwise)
# scalars_ref lives in SMEM: [start_value, log(end_value/start_value)] (f32).
# The same body works for 1-D and 2-D blocks and any floating input dtype
# (cast to f32 on load; output is f32).
# ---------------------------------------------------------------------------
def _exp_schedule_kernel(scalars_ref, progress_ref, out_ref):
    sv = scalars_ref[0]
    lr = scalars_ref[1]
    p = progress_ref[...].astype(jnp.float32)
    out_ref[...] = sv * jnp.exp(p * lr)


def _choose_block_rows(rows: int, lane: int, block_elems: int, row_align: int) -> int:
    """Rows per block: ~block_elems elements, but keep >=4 grid steps so the
    pipeline and the v7x dual-TC 'parallel' split stay active."""
    if rows <= row_align:
        return rows  # single full block (block dim == full array dim is legal)
    br = max(row_align, (block_elems // lane) // row_align * row_align)
    cap = max(row_align, _round_up(pl.cdiv(rows, 4), row_align))
    return min(br, cap)


def _pallas_exp_schedule(flat, scalars, *, block_elems, lane):
    """flat: 1-D floating array.  scalars: f32[2] = [start_value, log_ratio].
    Returns 1-D f32 array of the same length."""
    n = flat.shape[0]
    itemsize = jnp.dtype(flat.dtype).itemsize
    # Sublane packing: 8 rows/vreg for 4-byte, 16 for 2-byte, 32 for 1-byte.
    row_align = max(8, 32 // itemsize)

    cost = pl.CostEstimate(
        flops=2 * n, transcendentals=n, bytes_accessed=n * itemsize + n * 4 + 8
    )
    cparams = pltpu.CompilerParams(
        dimension_semantics=("parallel",),
        vmem_limit_bytes=_VMEM_LIMIT_BYTES,
    )
    smem_spec = pl.BlockSpec(memory_space=pltpu.MemorySpace.SMEM)

    # Prefer a lane-dense 2-D slab: widest lane width (multiple of 128) that
    # divides n, so the reshape is free (no host-side pad or copy).
    lane_candidates = [lane] + [l for l in (1024, 512, 256, 128) if l != lane]
    chosen = next((l for l in lane_candidates if l % 128 == 0 and n % l == 0), None)

    if chosen is not None:
        rows = n // chosen
        br = _choose_block_rows(rows, chosen, block_elems, row_align)
        x2d = flat.reshape(rows, chosen)
        out2d = pl.pallas_call(
            _exp_schedule_kernel,
            out_shape=jax.ShapeDtypeStruct((rows, chosen), jnp.float32),
            grid=(pl.cdiv(rows, br),),
            in_specs=[smem_spec, pl.BlockSpec((br, chosen), lambda i: (i, 0))],
            out_specs=pl.BlockSpec((br, chosen), lambda i: (i, 0)),
            compiler_params=cparams,
            cost_estimate=cost,
        )(scalars, x2d)
        return out2d.reshape(-1)

    # Ragged size (n not divisible by 128): 1-D layout; Pallas masks the partial
    # last block (OOB reads discarded, OOB writes skipped) -> zero extra HBM
    # passes (a pad/concat-based 2-D reroute would add a full read+write pass).
    # Tile ~2 MiB f32 per buffer so per-step overhead is negligible.
    tile = max(1024, (block_elems // 2) // 1024 * 1024)
    blk = n if n <= tile else tile  # full array, or a multiple of 1024
    out = pl.pallas_call(
        _exp_schedule_kernel,
        out_shape=jax.ShapeDtypeStruct((n,), jnp.float32),
        grid=(pl.cdiv(n, blk),),
        in_specs=[smem_spec, pl.BlockSpec((blk,), lambda i: (i,))],
        out_specs=pl.BlockSpec((blk,), lambda i: (i,)),
        compiler_params=cparams,
        cost_estimate=cost,
    )(scalars, flat)
    return out


def exponential_weight_schedule_segment(
    progress,
    *,
    start_value: float,
    end_value: float,
    block_elems: int = 1 << 20,   # ~4 MiB f32 per output block in the 2-D path
    lane: int = 1024,
    min_pallas_size: int = 1 << 20,
    use_pallas=None,
):
    """Vectorized ExponentialWeightScheduleSegment.forward over `progress`.

    `progress` may be any shape (or a Python scalar); returns same shape, f32.
    """
    progress = jnp.asarray(progress)
    if (not jnp.issubdtype(progress.dtype, jnp.floating)) or progress.dtype == jnp.float64:
        progress = progress.astype(jnp.float32)
    orig_shape = progress.shape
    n = int(progress.size)
    if n == 0:  # empty input guard
        return jnp.zeros(orig_shape, jnp.float32)

    sv = float(start_value)
    ev = float(end_value)
    ratio = (ev / sv) if sv != 0.0 else math.inf
    if not (ratio > 0.0 and math.isfinite(ratio)):
        # Degenerate ratio (zero / negative / inf): keep pow semantics
        # (per-element NaNs/infs) instead of raising in math.log on the host.
        p32 = progress.astype(jnp.float32)
        return (jnp.float32(sv) * jnp.power(jnp.float32(ratio), p32)).reshape(orig_shape)

    log_ratio = math.log(ratio)

    if use_pallas is None:
        use_pallas = n >= min_pallas_size
    if not use_pallas:
        # Small / scalar fast path: XLA's fused loop already hits the roofline;
        # a Pallas launch is pure overhead here.
        p32 = progress.astype(jnp.float32)
        return (jnp.float32(sv) * jnp.exp(p32 * jnp.float32(log_ratio))).reshape(orig_shape)

    # Schedule parameters are runtime data (SMEM scalars) -> no recompile when
    # (start_value, end_value) change; only shape/block changes recompile.
    scalars = jnp.array([sv, log_ratio], dtype=jnp.float32)
    flat = progress.reshape(-1)  # contiguous -> free
    out = _pallas_exp_schedule(flat, scalars, block_elems=block_elems, lane=lane)
    return out.reshape(orig_shape)


class ExponentialWeightScheduleSegment:
    """JAX/Pallas port of the PyTorch module (same constructor signature)."""

    def __init__(self, end_point: float, start_value: float, end_value: float):
        self.end_point = end_point
        self._start_value = float(start_value)
        self._end_value = float(end_value)

    def forward(self, progress, **kwargs):
        return exponential_weight_schedule_segment(
            progress,
            start_value=self._start_value,
            end_value=self._end_value,
            **kwargs,
        )

    __call__ = forward

    def __repr__(self):
        return "ExponentialWeightScheduleSegment({}, {}, {})".format(
            self.end_point, self._start_value, self._end_value
        )


if __name__ == "__main__":
    # Deterministic "parameters" (from __init__; no checkpoint loading).
    end_point, start_value, end_value = 1.0, 0.1, 10.0
    module = ExponentialWeightScheduleSegment(end_point, start_value, end_value)

    def ref(p):
        return start_value * (end_value / start_value) ** p

    key = jax.random.PRNGKey(0)
    k1, k2, k3, k4, k5, k6 = jax.random.split(key, 6)

    # --- Pallas path: lane-dense 2-D slab, single full block -----------------
    p1 = jax.random.uniform(k1, (8, 1024), dtype=jnp.float32)
    o1 = jax.block_until_ready(module(p1, use_pallas=True))
    assert o1.shape == p1.shape and o1.dtype == jnp.float32
    assert jnp.allclose(o1, ref(p1), rtol=1e-5, atol=1e-6)

    # --- Pallas path: 2-D, multi-block grid, exact division ------------------
    p2 = jax.random.uniform(k2, (40, 1024), dtype=jnp.float32)
    o2 = jax.block_until_ready(module(p2, use_pallas=True, block_elems=8 * 1024))
    assert jnp.allclose(o2, ref(p2), rtol=1e-5, atol=1e-6)

    # --- Pallas path: 2-D, multi-block grid with masked partial last block ---
    p3 = jax.random.uniform(k3, (20, 1024), dtype=jnp.float32)
    o3 = jax.block_until_ready(module(p3, use_pallas=True, block_elems=8 * 1024))
    assert jnp.allclose(o3, ref(p3), rtol=1e-5, atol=1e-6)

    # --- Pallas path: bf16 input kept narrow through the BlockSpec -----------
    p4 = jax.random.uniform(k4, (64, 1024), dtype=jnp.bfloat16)
    o4 = jax.block_until_ready(module(p4, use_pallas=True, block_elems=16 * 1024))
    assert o4.dtype == jnp.float32
    assert jnp.allclose(o4, ref(p4.astype(jnp.float32)), rtol=1e-5, atol=1e-6)

    # --- Pallas path: ragged size -> 1-D layout, single full-array block -----
    p5 = jax.random.uniform(k5, (3, 1111), dtype=jnp.float32)
    o5 = jax.block_until_ready(module(p5, use_pallas=True))
    assert o5.shape == p5.shape
    assert jnp.allclose(o5, ref(p5), rtol=1e-5, atol=1e-6)

    # --- Pallas path: ragged 1-D, multi-block grid with masked last block ----
    p6 = jax.random.uniform(k6, (20000,), dtype=jnp.float32)
    o6 = jax.block_until_ready(module(p6, use_pallas=True, block_elems=16 * 1024))
    assert jnp.allclose(o6, ref(p6), rtol=1e-5, atol=1e-6)

    # --- small-batch / scalar fast path (no Pallas launch by design) ---------
    p7 = jax.random.uniform(k1, (8,), dtype=jnp.float32)
    o7 = jax.block_until_ready(module(p7))
    assert jnp.allclose(o7, ref(p7), rtol=1e-5, atol=1e-6)

    s = jax.block_until_ready(module(0.5))
    assert abs(float(s) - ref(0.5)) < 1e-5

    # --- changing schedule parameters reuses the same kernel (SMEM scalars) --
    module2 = ExponentialWeightScheduleSegment(1.0, 2.0, 0.25)
    o8 = jax.block_until_ready(module2(p1, use_pallas=True))
    assert jnp.allclose(o8, 2.0 * (0.25 / 2.0) ** p1, rtol=1e-5, atol=1e-6)

    # --- empty-input guard ----------------------------------------------------
    e = jax.block_until_ready(module(jnp.zeros((0,), jnp.float32)))
    assert e.shape == (0,)

    print("KERNEL_OK")
</pallas_src>

<mosaic_0001>
module attributes {stable_mosaic.version = 11 : i64} {
  func.func @_exp_schedule_kernel(%arg0: i32, %arg1: memref<2xf32, #tpu.memory_space<smem>>, %arg2: memref<8x1024xf32, #tpu.memory_space<vmem>>, %arg3: memref<8x1024xf32, #tpu.memory_space<vmem>>) attributes {dimension_semantics = [#tpu.dimension_semantics<parallel>], iteration_bounds = array<i64: 1>, scalar_prefetch = 0 : i64, scratch_operands = 0 : i64, tpu.core_type = #tpu.core_type<tc>, window_params = [{transform_indices = @transform_0, window_bounds = array<i64: 2>}, {transform_indices = @transform_1, window_bounds = array<i64: 8, 1024>}, {transform_indices = @transform_2, window_bounds = array<i64: 8, 1024>}]} {
    %c0 = arith.constant 0 : index
    %0 = memref.load %arg1[%c0] : memref<2xf32, #tpu.memory_space<smem>>
    %c1 = arith.constant 1 : index
    %1 = memref.load %arg1[%c1] : memref<2xf32, #tpu.memory_space<smem>>
    %c0_0 = arith.constant 0 : index
    %c0_1 = arith.constant 0 : index
    %2 = vector.load %arg2[%c0_0, %c0_1] : memref<8x1024xf32, #tpu.memory_space<vmem>>, vector<8x1024xf32>
    %3 = vector.broadcast %1 : f32 to vector<8x1024xf32>
    %4 = arith.mulf %2, %3 : vector<8x1024xf32>
    %5 = math.exp %4 : vector<8x1024xf32>
    %6 = vector.broadcast %0 : f32 to vector<8x1024xf32>
    %7 = arith.mulf %6, %5 : vector<8x1024xf32>
    %c0_2 = arith.constant 0 : index
    %c0_3 = arith.constant 0 : index
    %8 = vector.load %arg3[%c0_2, %c0_3] : memref<8x1024xf32, #tpu.memory_space<vmem>>, vector<8x1024xf32>
    tpu.vector_store %arg3[%c0_2, %c0_3], %7 {strides = array<i32>} : memref<8x1024xf32, #tpu.memory_space<vmem>>, vector<8x1024xf32>,
    return
  }
  func.func @transform_0(%arg0: i32) -> i32 {
    %c0_i32 = arith.constant 0 : i32
    %c0_i32_0 = arith.constant 0 : i32
    return %c0_i32 : i32
  }
  func.func @transform_1(%arg0: i32) -> (i32, i32) {
    %c0_i32 = arith.constant 0 : i32
    %c0_i32_0 = arith.constant 0 : i32
    return %arg0, %c0_i32 : i32, i32
  }
  func.func @transform_2(%arg0: i32) -> (i32, i32) {
    %c0_i32 = arith.constant 0 : i32
    %c0_i32_0 = arith.constant 0 : i32
    return %arg0, %c0_i32 : i32, i32
  }
}

</mosaic_0001>

<llo_original>
// kernel: tpu_custom_call.1
$region0: #{tpu_custom_call.1}
  #allocation0 [shape = 'u32[]', space=smem, size = 0x4, offset = 0x4, fixed_abs, tag = 'smem constant byte address 0x4 - core index']
  #allocation1 [shape = 'u32[144,128]{1,0:T(1,128)}', space=vmem, size = 0x12000, scoped, tag = 'internal scratch']
  %s0 = inlined_call_operand.hbm [shape: f32[2], index: 0, kind: input, shape index: {}]
  %s1 = inlined_call_operand.hbm [shape: f32[8,1024], index: 1, kind: input, shape index: {}]
  %s2 = inlined_call_operand.hbm [shape: f32[8,1024], index: 2, kind: output, shape index: {}]
  %s3 = sld [smem:[#allocation0]]
  $region26: #{tpu_custom_call.1} parent=0
    _
  %s5 = ssub.s32 1, %s3
  %s6 = scalar_select 0, %s5, %s3
  $region1: #{tpu_custom_call.1} parent=0
    #allocation2 [shape = 'u8[512]{0}', space=smem, size = 0x200, scoped, tag = 'input window, operand 0, single buffered']
    #allocation3 [shape = 's32[1]{0}', space=sflag, size = 0x4, scoped, tag = 'scoped memory for tpu_custom_call.1']
    #allocation4 [shape = 's32[1]{0}', space=sflag, size = 0x4, scoped, tag = 'scoped memory for tpu_custom_call.1']
    #allocation5 [shape = 's32[1]{0}', space=sflag, size = 0x4, scoped, tag = 'scoped memory for tpu_custom_call.1']
    #allocation6 [shape = 'u8[32768]{0}', space=vmem, size = 0x8000, scoped, tag = 'input window, operand 1, single buffered']
    #allocation7 [shape = 'u8[32768]{0}', space=vmem, size = 0x8000, scoped, tag = 'output window, operand 0, single buffered']
    %7 = vsyncpa [#allocation5], 0
    %8 = vsyncpa [#allocation3], 0
    %9 = vsyncpa [#allocation4], 0
    // Predicated region
    $region2: #{tpu_custom_call.1} parent=1 // pred_check
      _
    $region3: #{tpu_custom_call.1} parent=1 // pred_check_branch
      %11 = sbr.rel (0) target = $region5
    $region4: #{tpu_custom_call.1} parent=1 // pred_region
      %s13 = ssub.s32 16, 16
      %14 = vsyncadd [#allocation5], %s13
      %17 = dma.hbm_to_smem %s0, 16, [#allocation2], [#allocation5]
    $region5: #{tpu_custom_call.1} parent=1 // pred_fallthru
      _
    // Predicated region
    $region6: #{tpu_custom_call.1} parent=1 // pred_check
      _
    $region7: #{tpu_custom_call.1} parent=1 // pred_check_branch
      %19 = sbr.rel (0) target = $region9
    $region8: #{tpu_custom_call.1} parent=1 // pred_region
      %s21 = ssub.s32 1024, 1024
      %22 = vsyncadd [#allocation3], %s21
      %s24 = sshll.u32 [#allocation6], 4
      %s25 = int_to_ptr.vmem [resolvable:$true] %s24
      %27 = dma.hbm_to_vmem [thread:$0]  %s1, 1024, %s25, [#allocation3]
    $region9: #{tpu_custom_call.1} parent=1 // pred_fallthru
      _
    // Predicated region
    $region10: #{tpu_custom_call.1} parent=1 // pred_check
      _
    $region11: #{tpu_custom_call.1} parent=1 // pred_check_branch
      %29 = sbr.rel (0) target = $region13
    $region12: #{tpu_custom_call.1} parent=1 // pred_region
      %30 = dma.done [#allocation5], 16
    $region13: #{tpu_custom_call.1} parent=1 // pred_fallthru
      _
    // Predicated region
    $region14: #{tpu_custom_call.1} parent=1 // pred_check
      _
    $region15: #{tpu_custom_call.1} parent=1 // pred_check_branch
      %32 = sbr.rel (0) target = $region17
    $region16: #{tpu_custom_call.1} parent=1 // pred_region
      %33 = dma.done [#allocation3], 1024
    $region17: #{tpu_custom_call.1} parent=1 // pred_fallthru
      _
    %34 = sfence
    %s35 = sld [smem:[#allocation2]]
    %s36 = sld [smem:[#allocation2 + $0x1]]
    %v37 = vld [vmem:[#allocation6] sm:$0xff]
    %v38 = vld [vmem:[#allocation6 + $0x8] sm:$0xff]
    %v39 = vld [vmem:[#allocation6 + $0x10] sm:$0xff]
    %v40 = vld [vmem:[#allocation6 + $0x18] sm:$0xff]
    %v41 = vld [vmem:[#allocation6 + $0x20] sm:$0xff]
    %v42 = vld [vmem:[#allocation6 + $0x28] sm:$0xff]
    %v43 = vld [vmem:[#allocation6 + $0x30] sm:$0xff]
    %v44 = vld [vmem:[#allocation6 + $0x38] sm:$0xff]
    %v45 = vstv %s36
    %v46 = vmul.f32 %v37, %v45
    %v47 = vmul.f32 %v38, %v45
    %v48 = vmul.f32 %v39, %v45
    %v49 = vmul.f32 %v40, %v45
    %v50 = vmul.f32 %v41, %v45
    %v51 = vmul.f32 %v42, %v45
    %v52 = vmul.f32 %v43, %v45
    %v53 = vmul.f32 %v44, %v45
    %v54 = vmul.f32 %v46, 1.442695
    %v55 = vpow.pop %v54
    %v56 = vmul.f32 %v47, 1.442695
    %v57 = vpow.pop %v56
    %v58 = vmul.f32 %v48, 1.442695
    %v59 = vpow.pop %v58
    %v60 = vmul.f32 %v49, 1.442695
    %v61 = vpow.pop %v60
    %v62 = vmul.f32 %v50, 1.442695
    %v63 = vpow.pop %v62
    %v64 = vmul.f32 %v51, 1.442695
    %v65 = vpow.pop %v64
    %v66 = vmul.f32 %v52, 1.442695
    %v67 = vpow.pop %v66
    %v68 = vmul.f32 %v53, 1.442695
    %v69 = vpow.pop %v68
    %v70 = vstv %s35
    %v71 = vmul.f32 %v70, %v55
    %v72 = vmul.f32 %v70, %v57
    %v73 = vmul.f32 %v70, %v59
    %v74 = vmul.f32 %v70, %v61
    %v75 = vmul.f32 %v70, %v63
    %v76 = vmul.f32 %v70, %v65
    %v77 = vmul.f32 %v70, %v67
    %v78 = vmul.f32 %v70, %v69
    %79 = vst [vmem:[#allocation7] sm:$0xff] %v71
    %80 = vst [vmem:[#allocation7 + $0x8] sm:$0xff] %v72
    %81 = vst [vmem:[#allocation7 + $0x10] sm:$0xff] %v73
    %82 = vst [vmem:[#allocation7 + $0x18] sm:$0xff] %v74
    %83 = vst [vmem:[#allocation7 + $0x20] sm:$0xff] %v75
    %84 = vst [vmem:[#allocation7 + $0x28] sm:$0xff] %v76
    %85 = vst [vmem:[#allocation7 + $0x30] sm:$0xff] %v77
    %86 = vst [vmem:[#allocation7 + $0x38] sm:$0xff] %v78
    // Predicated region
    $region18: #{tpu_custom_call.1} parent=1 // pred_check
      _
    $region19: #{tpu_custom_call.1} parent=1 // pred_check_branch
      %88 = sbr.rel (0) target = $region21
    $region20: #{tpu_custom_call.1} parent=1 // pred_region
      %s90 = ssub.s32 1024, 1024
      %91 = vsyncadd [#allocation4], %s90
      %s93 = sshll.u32 [#allocation7], 4
      %s94 = int_to_ptr.vmem [resolvable:$true] %s93
      %96 = dma.vmem_to_hbm [thread:$0]  %s94, 1024, %s2, [#allocation4]
    $region21: #{tpu_custom_call.1} parent=1 // pred_fallthru
      _
    // Predicated region
    $region22: #{tpu_custom_call.1} parent=1 // pred_check
      _
    $region23: #{tpu_custom_call.1} parent=1 // pred_check_branch
      %98 = sbr.rel (0) target = $region25
    $region24: #{tpu_custom_call.1} parent=1 // pred_region
      %99 = dma.done [#allocation4], 1024
    $region25: #{tpu_custom_call.1} parent=1 // pred_fallthru
      _
    %100 = vsyncpa [#allocation3], 1
    %101 = vsyncpa [#allocation4], 1
    %102 = vsyncpa [#allocation5], 1

</llo_original>
